<compile_context>
chip_gen: v6e
topology: v6e:2x2x1
jax: 0.10.0
libtpu: 0.0.40
codegen_flags: <defaults>
</compile_context>

<pallas_src>
import math

import jax
import jax.numpy as jnp
from jax.experimental import pallas as pl
from jax.experimental.pallas import tpu as pltpu


def attention_kernel(rb_ref, enc_ref, we_ref, v_ref, out_ref):
    """One block of Bt batch rows of the additive-attention scorer.

    rb_ref : (Bt, Hp)    f32 -- hidden @ W_h.T + bias for these rows (precomputed)
    enc_ref: (T, Bt, 2H) f32 -- encoder outputs, native seq-first layout
    we_ref : (2H, Hp)    f32 -- W[:, 2H:].T zero-padded to Hp lanes (resident)
    v_ref  : (1, Hp)     f32 -- scoring vector, zero-padded (resident)
    out_ref: (Bt, T)     f32 -- softmax attention weights over T (batch-major)
    """
    bt = rb_ref.shape[0]

    # Batch-major rearrangement once per block, in VMEM (cheap vs. HBM bandwidth);
    # the encoder tensor is never transposed in HBM.
    enc = pltpu.einshape("tbh->bth", enc_ref[...].astype(jnp.float32))     # (Bt, T, 2H)
    we = we_ref[...]                                                       # (2H, Hp)
    v = v_ref[...]                                                         # (1, Hp)

    for b in range(bt):                      # static unroll; Bt <= 8
        # Encoder projection: M = T rows per MXU push (no M=1 matmuls left here).
        proj = jnp.dot(enc[b], we, preferred_element_type=jnp.float32)     # (T, Hp)
        # row_bias already folds the Linear bias -> a single (T, Hp)-wide add.
        energy = jnp.maximum(proj + rb_ref[pl.ds(b, 1), :], 0.0)           # (T, Hp)
        # scores[0, t] = sum_h v[h] * energy[t, h]   (NT dot -> lane-dense (1, T))
        scores = jax.lax.dot_general(
            v, energy,
            dimension_numbers=(((1,), (1,)), ((), ())),
            preferred_element_type=jnp.float32)                            # (1, T)
        # Single-pass softmax over T (T kept whole per block); reciprocal on EUP.
        m = jnp.max(scores, axis=-1, keepdims=True)
        e = jnp.exp(scores - m)
        denom = jnp.sum(e, axis=-1, keepdims=True)
        out_ref[pl.ds(b, 1), :] = e * pl.reciprocal(denom, approx=True)


def attention_forward(hidden, encoder_outputs, w, b, v):
    """hidden: (2, B, H); encoder_outputs: (T, B, 2H);
    w: (H, 4H) torch-Linear layout; b: (H,); v: (H,).
    Returns (B, 1, T) attention weights (softmax over the T axis)."""
    _, B, H = hidden.shape
    T = encoder_outputs.shape[0]
    H2 = 2 * H
    Hp = ((H + 127) // 128) * 128        # pad Linear output dim to lane width
    Bt = B if B <= 8 else 8              # batch rows per grid step (full B or mult of 8)
    nb = pl.cdiv(B, Bt)

    w32 = w.astype(jnp.float32)
    bias32 = b.astype(jnp.float32)
    v32 = v.astype(jnp.float32)

    # torch.reshape((2,B,H) -> (1,B,2H)) is a row-major reshape; (B, 2H) has the
    # identical flat element order, so this reproduces it exactly.
    hid = jnp.reshape(hidden.astype(jnp.float32), (B, H2))                   # (B, 2H)

    # Hidden projection + bias as ONE tiny XLA matmul (kills the in-kernel M=1 dot);
    # zero-padded to Hp lanes so kernel vregs stay lane-dense.
    rb = jnp.zeros((B, Hp), jnp.float32).at[:, :H].set(
        hid @ w32[:, :H2].T + bias32[None, :])                               # (B, Hp)

    # NOTE: we_p / v_p depend only on the module parameters; when weights are reused
    # across calls this prep can be hoisted out of the per-call path unchanged.
    we_p = jnp.zeros((H2, Hp), jnp.float32).at[:, :H].set(w32[:, H2:].T)     # (2H, Hp)
    v_p = jnp.zeros((1, Hp), jnp.float32).at[:, :H].set(v32[None, :])        # (1, Hp)

    # VMEM budget: double-buffered enc block + rearranged copy + residents, clamped
    # to a range safe on v5e/v6e (128 MiB physical) and v7x (64 MiB physical).
    enc_block_bytes = T * Bt * H2 * 4
    est = (4 * enc_block_bytes + 2 * (H2 * Hp * 4)
           + 4 * (Bt * (Hp + T) * 4) + (1 << 20))
    vmem_limit = int(min(max(est, 32 * 1024 * 1024), 48 * 1024 * 1024))
    # TODO(synk): for very large T*H (enc block + scratch beyond ~48 MiB, esp. v7x)
    # add a second 'arbitrary' grid axis over T with online-softmax accumulators.

    scores = pl.pallas_call(
        attention_kernel,
        out_shape=jax.ShapeDtypeStruct((B, T), jnp.float32),
        grid_spec=pltpu.PrefetchScalarGridSpec(
            num_scalar_prefetch=0,
            grid=(nb,),
            in_specs=[
                pl.BlockSpec((Bt, Hp), lambda i: (i, 0)),        # row_bias rows
                pl.BlockSpec((T, Bt, H2), lambda i: (0, i, 0)),  # encoder, native layout
                pl.BlockSpec((H2, Hp), lambda i: (0, 0)),        # W_e (resident, DMA once)
                pl.BlockSpec((1, Hp), lambda i: (0, 0)),         # v   (resident, DMA once)
            ],
            out_specs=pl.BlockSpec((Bt, T), lambda i: (i, 0)),
        ),
        compiler_params=pltpu.CompilerParams(
            dimension_semantics=("parallel",),   # shard batch blocks across TCs (v7x)
            vmem_limit_bytes=vmem_limit,
        ),
    )(rb, encoder_outputs, we_p, v_p)
    # TODO(synk): on v7x with B <= Bt there is a single grid step, so one of the two
    # TensorCores idles; a T-parallel axis would be needed to fill both for tiny B.

    # (B, T) -> (B, 1, T): metadata-only reshape, no data movement.
    return scores[:, None, :]


def _reference(hidden, encoder_outputs, w, b, v):
    """Pure-JAX f32 reference mirroring the PyTorch forward."""
    _, B, H = hidden.shape
    T = encoder_outputs.shape[0]
    hidden_r = jnp.reshape(hidden, (1, B, 2 * H))
    h = jnp.transpose(jnp.broadcast_to(hidden_r, (T, B, 2 * H)), (1, 0, 2))
    enc = jnp.transpose(encoder_outputs, (1, 0, 2))
    catted = jnp.concatenate([h, enc], axis=2)
    energy = jax.nn.relu(catted @ w.T + b)            # (B, T, H)
    scores = jnp.einsum("bth,h->bt", energy, v)       # (B, T)
    return jax.nn.softmax(scores, axis=1)[:, None, :]


if __name__ == "__main__":
    B, H, T = 2, 32, 8          # batch, hidden_size, encoder timesteps
    key = jax.random.PRNGKey(0)
    k1, k2, k3, k4, k5 = jax.random.split(key, 5)

    hidden = jax.random.normal(k1, (2, B, H), dtype=jnp.float32)               # (2, B, H)
    encoder_outputs = jax.random.normal(k2, (T, B, 2 * H), dtype=jnp.float32)  # (T, B, 2H)

    lin_k = 1.0 / math.sqrt(4 * H)
    w = jax.random.uniform(k3, (H, 4 * H), minval=-lin_k, maxval=lin_k, dtype=jnp.float32)
    b = jax.random.uniform(k4, (H,), minval=-lin_k, maxval=lin_k, dtype=jnp.float32)
    stdv = 1.0 / math.sqrt(H)
    v = jax.random.uniform(k5, (H,), minval=-stdv, maxval=stdv, dtype=jnp.float32)

    out = jax.jit(attention_forward)(hidden, encoder_outputs, w, b, v)
    out = jax.block_until_ready(out)

    ref = _reference(hidden, encoder_outputs, w, b, v)
    assert out.shape == (B, 1, T), out.shape
    # f32 in-kernel compute; approx reciprocal in the softmax -> small tolerance.
    assert jnp.allclose(out, ref, atol=1e-2, rtol=0.0), "mismatch vs reference"

    print("KERNEL_OK")
</pallas_src>

<mosaic_0001>
module attributes {stable_mosaic.version = 11 : i64} {
  func.func @attention_kernel(%arg0: i32, %arg1: memref<2x128xf32, #tpu.memory_space<vmem>>, %arg2: memref<8x2x64xf32, #tpu.memory_space<vmem>>, %arg3: memref<64x128xf32, #tpu.memory_space<vmem>>, %arg4: memref<1x128xf32, #tpu.memory_space<vmem>>, %arg5: memref<2x8xf32, #tpu.memory_space<vmem>>) attributes {dimension_semantics = [#tpu.dimension_semantics<parallel>], iteration_bounds = array<i64: 1>, scalar_prefetch = 0 : i64, scratch_operands = 0 : i64, tpu.core_type = #tpu.core_type<tc>, window_params = [{transform_indices = @transform_0, window_bounds = array<i64: 2, 128>}, {transform_indices = @transform_1, window_bounds = array<i64: 8, 2, 64>}, {pipeline_mode = #tpu.pipeline_mode<synchronous>, transform_indices = @transform_2, window_bounds = array<i64: 64, 128>}, {pipeline_mode = #tpu.pipeline_mode<synchronous>, transform_indices = @transform_3, window_bounds = array<i64: 1, 128>}, {transform_indices = @transform_4, window_bounds = array<i64: 2, 8>}]} {
    %c0 = arith.constant 0 : index
    %c0_0 = arith.constant 0 : index
    %c0_1 = arith.constant 0 : index
    %0 = vector.load %arg2[%c0, %c0_0, %c0_1] : memref<8x2x64xf32, #tpu.memory_space<vmem>>, vector<8x2x64xf32>
    %1 = tpu.transpose %0, [1, 0, 2] : vector<8x2x64xf32> -> vector<2x8x64xf32>
    %c0_2 = arith.constant 0 : index
    %c0_3 = arith.constant 0 : index
    %2 = vector.load %arg3[%c0_2, %c0_3] : memref<64x128xf32, #tpu.memory_space<vmem>>, vector<64x128xf32>
    %c0_4 = arith.constant 0 : index
    %c0_5 = arith.constant 0 : index
    %3 = vector.load %arg4[%c0_4, %c0_5] : memref<1x128xf32, #tpu.memory_space<vmem>>, vector<1x128xf32>
    %4 = vector.extract_strided_slice %1 {offsets = [0, 0, 0], sizes = [1, 8, 64], strides = [1, 1, 1]} : vector<2x8x64xf32> to vector<1x8x64xf32>
    %5 = vector.shape_cast %4 : vector<1x8x64xf32> to vector<8x64xf32>
    %cst = arith.constant dense<0.000000e+00> : vector<8x128xf32>
    %6 = tpu.matmul %5, %2, %cst {dimension_numbers = #tpu.dot_dimension_numbers<[1], [0], [0], [1], [0, 0, 1, 1], [], []>} : vector<8x64xf32>, vector<64x128xf32>, vector<8x128xf32> -> vector<8x128xf32>
    %c0_6 = arith.constant 0 : index
    %c0_7 = arith.constant 0 : index
    %7 = vector.load %arg1[%c0_6, %c0_7] : memref<2x128xf32, #tpu.memory_space<vmem>>, vector<1x128xf32>
    %8 = vector.broadcast %7 : vector<1x128xf32> to vector<8x128xf32>
    %9 = arith.addf %6, %8 : vector<8x128xf32>
    %cst_8 = arith.constant 0.000000e+00 : f32
    %10 = vector.broadcast %cst_8 : f32 to vector<8x128xf32>
    %11 = arith.maximumf %9, %10 : vector<8x128xf32>
    %cst_9 = arith.constant dense<0.000000e+00> : vector<1x8xf32>
    %12 = tpu.matmul %3, %11, %cst_9 {dimension_numbers = #tpu.dot_dimension_numbers<[1], [1], [0], [0], [0, 0, 1, 0], [], []>} : vector<1x128xf32>, vector<8x128xf32>, vector<1x8xf32> -> vector<1x8xf32>
    %cst_10 = arith.constant dense<0xFF800000> : vector<1xf32>
    %13 = vector.multi_reduction <maximumf>, %12, %cst_10 [1] : vector<1x8xf32> to vector<1xf32>
    %14 = vector.shape_cast %13 : vector<1xf32> to vector<1x1xf32>
    %15 = vector.broadcast %14 : vector<1x1xf32> to vector<1x8xf32>
    %16 = arith.subf %12, %15 : vector<1x8xf32>
    %17 = math.exp %16 : vector<1x8xf32>
    %cst_11 = arith.constant dense<0.000000e+00> : vector<1xf32>
    %18 = vector.multi_reduction <add>, %17, %cst_11 [1] : vector<1x8xf32> to vector<1xf32>
    %19 = vector.shape_cast %18 : vector<1xf32> to vector<1x1xf32>
    %20 = tpu.reciprocal %19 {approx = true} : vector<1x1xf32> -> vector<1x1xf32>
    %21 = vector.broadcast %20 : vector<1x1xf32> to vector<1x8xf32>
    %22 = arith.mulf %17, %21 : vector<1x8xf32>
    %c0_12 = arith.constant 0 : index
    %c0_13 = arith.constant 0 : index
    %23 = vector.load %arg5[%c0_12, %c0_13] : memref<2x8xf32, #tpu.memory_space<vmem>>, vector<1x8xf32>
    tpu.vector_store %arg5[%c0_12, %c0_13], %22 {strides = array<i32>} : memref<2x8xf32, #tpu.memory_space<vmem>>, vector<1x8xf32>,
    %24 = vector.extract_strided_slice %1 {offsets = [1, 0, 0], sizes = [1, 8, 64], strides = [1, 1, 1]} : vector<2x8x64xf32> to vector<1x8x64xf32>
    %25 = vector.shape_cast %24 : vector<1x8x64xf32> to vector<8x64xf32>
    %cst_14 = arith.constant dense<0.000000e+00> : vector<8x128xf32>
    %26 = tpu.matmul %25, %2, %cst_14 {dimension_numbers = #tpu.dot_dimension_numbers<[1], [0], [0], [1], [0, 0, 1, 1], [], []>} : vector<8x64xf32>, vector<64x128xf32>, vector<8x128xf32> -> vector<8x128xf32>
    %c1 = arith.constant 1 : index
    %c0_15 = arith.constant 0 : index
    %27 = vector.load %arg1[%c1, %c0_15] : memref<2x128xf32, #tpu.memory_space<vmem>>, vector<1x128xf32>
    %28 = vector.broadcast %27 : vector<1x128xf32> to vector<8x128xf32>
    %29 = arith.addf %26, %28 : vector<8x128xf32>
    %cst_16 = arith.constant 0.000000e+00 : f32
    %30 = vector.broadcast %cst_16 : f32 to vector<8x128xf32>
    %31 = arith.maximumf %29, %30 : vector<8x128xf32>
    %cst_17 = arith.constant dense<0.000000e+00> : vector<1x8xf32>
    %32 = tpu.matmul %3, %31, %cst_17 {dimension_numbers = #tpu.dot_dimension_numbers<[1], [1], [0], [0], [0, 0, 1, 0], [], []>} : vector<1x128xf32>, vector<8x128xf32>, vector<1x8xf32> -> vector<1x8xf32>
    %cst_18 = arith.constant dense<0xFF800000> : vector<1xf32>
    %33 = vector.multi_reduction <maximumf>, %32, %cst_18 [1] : vector<1x8xf32> to vector<1xf32>
    %34 = vector.shape_cast %33 : vector<1xf32> to vector<1x1xf32>
    %35 = vector.broadcast %34 : vector<1x1xf32> to vector<1x8xf32>
    %36 = arith.subf %32, %35 : vector<1x8xf32>
    %37 = math.exp %36 : vector<1x8xf32>
    %cst_19 = arith.constant dense<0.000000e+00> : vector<1xf32>
    %38 = vector.multi_reduction <add>, %37, %cst_19 [1] : vector<1x8xf32> to vector<1xf32>
    %39 = vector.shape_cast %38 : vector<1xf32> to vector<1x1xf32>
    %40 = tpu.reciprocal %39 {approx = true} : vector<1x1xf32> -> vector<1x1xf32>
    %41 = vector.broadcast %40 : vector<1x1xf32> to vector<1x8xf32>
    %42 = arith.mulf %37, %41 : vector<1x8xf32>
    %c1_20 = arith.constant 1 : index
    %c0_21 = arith.constant 0 : index
    %43 = vector.load %arg5[%c1_20, %c0_21] : memref<2x8xf32, #tpu.memory_space<vmem>>, vector<1x8xf32>
    tpu.vector_store %arg5[%c1_20, %c0_21], %42 {strides = array<i32>} : memref<2x8xf32, #tpu.memory_space<vmem>>, vector<1x8xf32>,
    return
  }
  func.func @transform_0(%arg0: i32) -> (i32, i32) {
    %c0_i32 = arith.constant 0 : i32
    %c0_i32_0 = arith.constant 0 : i32
    return %arg0, %c0_i32 : i32, i32
  }
  func.func @transform_1(%arg0: i32) -> (i32, i32, i32) {
    %c0_i32 = arith.constant 0 : i32
    %c0_i32_0 = arith.constant 0 : i32
    %c0_i32_1 = arith.constant 0 : i32
    return %c0_i32, %arg0, %c0_i32_0 : i32, i32, i32
  }
  func.func @transform_2(%arg0: i32) -> (i32, i32) {
    %c0_i32 = arith.constant 0 : i32
    %c0_i32_0 = arith.constant 0 : i32
    %c0_i32_1 = arith.constant 0 : i32
    return %c0_i32, %c0_i32_0 : i32, i32
  }
  func.func @transform_3(%arg0: i32) -> (i32, i32) {
    %c0_i32 = arith.constant 0 : i32
    %c0_i32_0 = arith.constant 0 : i32
    %c0_i32_1 = arith.constant 0 : i32
    return %c0_i32, %c0_i32_0 : i32, i32
  }
  func.func @transform_4(%arg0: i32) -> (i32, i32) {
    %c0_i32 = arith.constant 0 : i32
    %c0_i32_0 = arith.constant 0 : i32
    return %arg0, %c0_i32 : i32, i32
  }
}

</mosaic_0001>

<llo_original>
// kernel: attention_forward.1
$region0: #{attention_forward.1}
  #allocation0 [shape = 'u32[]', space=smem, size = 0x4, offset = 0x4, fixed_abs, tag = 'smem constant byte address 0x4 - core index']
  #allocation1 [shape = 'u32[144,128]{1,0:T(1,128)}', space=vmem, size = 0x12000, scoped, tag = 'internal scratch']
  %s0 = inlined_call_operand.vmem [shape: f32[2,128], index: 0, kind: input, shape index: {}]
  %s1 = inlined_call_operand.vmem [shape: f32[8,2,64], index: 1, kind: input, shape index: {}]
  %s2 = inlined_call_operand.vmem [shape: f32[64,128], index: 2, kind: input, shape index: {}]
  %s3 = inlined_call_operand.vmem [shape: f32[1,128], index: 3, kind: input, shape index: {}]
  %s4 = inlined_call_operand.hbm [shape: f32[2,8], index: 4, kind: output, shape index: {}]
  %s5 = sld [smem:[#allocation0]]
  $region26: #{attention_forward.1} parent=0
    _
  %s7 = ssub.s32 1, %s5
  %s8 = scalar_select 0, %s7, %s5
  $region1: #{attention_forward.1} parent=0
    #allocation2 [shape = 'u8[1024]{0}', space=vmem, size = 0x400, scoped, tag = 'output window, operand 0, single buffered']
    #allocation3 [shape = 's32[1]{0}', space=sflag, size = 0x4, scoped, tag = 'scoped memory for attention_forward.1']
    %9 = vsyncpa [#allocation3], 0
    // Predicated region
    $region2: #{attention_forward.1} parent=1 // pred_check
      _
    $region3: #{attention_forward.1} parent=1 // pred_check_branch
      %11 = sbr.rel (0) target = $region5
    $region4: #{attention_forward.1} parent=1 // pred_region
      _
    $region5: #{attention_forward.1} parent=1 // pred_fallthru
      _
    // Predicated region
    $region6: #{attention_forward.1} parent=1 // pred_check
      _
    $region7: #{attention_forward.1} parent=1 // pred_check_branch
      %13 = sbr.rel (0) target = $region9
    $region8: #{attention_forward.1} parent=1 // pred_region
      _
    $region9: #{attention_forward.1} parent=1 // pred_fallthru
      _
    // Predicated region
    $region10: #{attention_forward.1} parent=1 // pred_check
      _
    $region11: #{attention_forward.1} parent=1 // pred_check_branch
      %15 = sbr.rel (0) target = $region13
    $region12: #{attention_forward.1} parent=1 // pred_region
      _
    $region13: #{attention_forward.1} parent=1 // pred_fallthru
      _
    // Predicated region
    $region14: #{attention_forward.1} parent=1 // pred_check
      _
    $region15: #{attention_forward.1} parent=1 // pred_check_branch
      %17 = sbr.rel (0) target = $region17
    $region16: #{attention_forward.1} parent=1 // pred_region
      _
    $region17: #{attention_forward.1} parent=1 // pred_fallthru
      _
    %v18 = vld [vmem:[%s1] sm:$0x3]
    %v19 = vld [vmem:[%s1 + $0x2] sm:$0x3]
    %v20 = vld [vmem:[%s1 + $0x4] sm:$0x3]
    %v21 = vld [vmem:[%s1 + $0x6] sm:$0x3]
    %v22 = vld [vmem:[%s1 + $0x8] sm:$0x3]
    %v23 = vld [vmem:[%s1 + $0xa] sm:$0x3]
    %v24 = vld [vmem:[%s1 + $0xc] sm:$0x3]
    %v25 = vld [vmem:[%s1 + $0xe] sm:$0x3]
    %v26 = vcombine.low %v18, %v20
    %v28 = vunpack.c.l.s4 1983009808
    %v29 = vunpack.c.0.s8 %v28
    %v30 = vlaneseq
    %v31 = vshrl.u32 %v30, 7
    %v32 = vsub.s32 %v29, %v31
    %v33 = vrot.slane %v26, %v32
    %v34 = vcombine.low %v19, %v21
    %v36 = vunpack.c.l.s4 1983009808
    %v37 = vunpack.c.0.s8 %v36
    %v38 = vlaneseq
    %v39 = vshrl.u32 %v38, 7
    %v40 = vsub.s32 %v37, %v39
    %v41 = vrot.slane %v34, %v40
    %v42 = vcombine.low %v22, %v24
    %v44 = vunpack.c.l.s4 1983009808
    %v45 = vunpack.c.0.s8 %v44
    %v46 = vlaneseq
    %v47 = vshrl.u32 %v46, 7
    %v48 = vsub.s32 %v45, %v47
    %v49 = vrot.slane %v42, %v48
    %v50 = vcombine.low %v23, %v25
    %v52 = vunpack.c.l.s4 1983009808
    %v53 = vunpack.c.0.s8 %v52
    %v54 = vlaneseq
    %v55 = vshrl.u32 %v54, 7
    %v56 = vsub.s32 %v53, %v55
    %v57 = vrot.slane %v50, %v56
    %v58 = vcombine.low %v33, %v41
    %v60 = vunpack.c.l.s4 1934713408
    %v61 = vunpack.c.0.s8 %v60
    %v62 = vlaneseq
    %v63 = vshrl.u32 %v62, 7
    %v64 = vsub.s32 %v61, %v63
    %v65 = vrot.slane %v58, %v64
    %v66 = vcombine.low %v49, %v57
    %v68 = vunpack.c.l.s4 1934713408
    %v69 = vunpack.c.0.s8 %v68
    %v70 = vlaneseq
    %v71 = vshrl.u32 %v70, 7
    %v72 = vsub.s32 %v69, %v71
    %v73 = vrot.slane %v66, %v72
    %v74 = vcombine.low %v65, %v73
    %v75 = vcombine.high %v65, %v73
    %v76 = vld [vmem:[%s2] sm:$0xff]
    %v77 = vld [vmem:[%s2 + $0x8] sm:$0xff]
    %v78 = vld [vmem:[%s2 + $0x10] sm:$0xff]
    %v79 = vld [vmem:[%s2 + $0x18] sm:$0xff]
    %v80 = vld [vmem:[%s2 + $0x20] sm:$0xff]
    %v81 = vld [vmem:[%s2 + $0x28] sm:$0xff]
    %v82 = vld [vmem:[%s2 + $0x30] sm:$0xff]
    %v83 = vld [vmem:[%s2 + $0x38] sm:$0xff]
    %v84 = vld [vmem:[%s3] sm:$0x1]
    %v85 = vld [vmem:[%s0] sm:$0x1]
    %v86 = vlaneseq
    %v87 = vshrl.u32 %v86, 7
    %v88 = vsub.s32 0, %v87
    %v89 = vrot.slane %v85, %v88
    %vm90 = vcmask 523264
    %v92 = vsel %vm90, %v74, 0
    %94 = vmatprep.subr.mxu0 0.0
    %95 = vmatpush1.msra.mxu0 0.0
    %96 = vmatprep.subr.mxu0 0.0
    %97 = vmatpush1.msra.mxu0 0.0
    %98 = vmatprep.subr.mxu0 0.0
    %99 = vmatpush1.msra.mxu0 0.0
    %100 = vmatprep.subr.mxu0 0.0
    %101 = vmatpush1.msra.mxu0 0.0
    %102 = vmatprep.subr.mxu0 0.0
    %103 = vmatpush1.msra.mxu0 0.0
    %104 = vmatprep.subr.mxu0 0.0
    %105 = vmatpush1.msra.mxu0 0.0
    %106 = vmatprep.subr.mxu0 0.0
    %107 = vmatpush1.msra.mxu0 0.0
    %108 = vmatprep.subr.mxu0 0.0
    %109 = vmatpush1.msra.mxu0 0.0
    %110 = vmatprep.subr.mxu0 0.0
    %111 = vmatpush1.msra.mxu0 %v83
    %112 = vmatprep.subr.mxu0 0.0
    %113 = vmatpush1.msra.mxu0 %v82
    %114 = vmatprep.subr.mxu0 0.0
    %115 = vmatpush1.msra.mxu0 %v81
    %116 = vmatprep.subr.mxu0 0.0
    %117 = vmatpush1.msra.mxu0 %v80
    %118 = vmatprep.subr.mxu0 0.0
    %119 = vmatpush1.msra.mxu0 %v79
    %120 = vmatprep.subr.mxu0 0.0
    %121 = vmatpush1.msra.mxu0 %v78
    %122 = vmatprep.subr.mxu0 0.0
    %123 = vmatpush1.msra.mxu0 %v77
    %124 = vmatprep.subr.mxu0 0.0
    %125 = vmatpush1.msra.mxu0 %v76
    %126 = vmatprep.subr.mxu0 0.0
    %127 = vmatpush2.msra.mxu0 0.0
    %128 = vmatprep.subr.mxu0 0.0
    %129 = vmatpush2.msra.mxu0 0.0
    %130 = vmatprep.subr.mxu0 0.0
    %131 = vmatpush2.msra.mxu0 0.0
    %132 = vmatprep.subr.mxu0 0.0
    %133 = vmatpush2.msra.mxu0 0.0
    %134 = vmatprep.subr.mxu0 0.0
    %135 = vmatpush2.msra.mxu0 0.0
    %136 = vmatprep.subr.mxu0 0.0
    %137 = vmatpush2.msra.mxu0 0.0
    %138 = vmatprep.subr.mxu0 0.0
    %139 = vmatpush2.msra.mxu0 0.0
    %140 = vmatprep.subr.mxu0 0.0
    %141 = vmatpush2.msra.mxu0 0.0
    %142 = vmatprep.subr.mxu0 0.0
    %143 = vmatpush2.msra.mxu0 0.0
    %144 = vmatprep.subr.mxu0 0.0
    %145 = vmatpush2.msra.mxu0 0.0
    %146 = vmatprep.subr.mxu0 0.0
    %147 = vmatpush2.msra.mxu0 0.0
    %148 = vmatprep.subr.mxu0 0.0
    %149 = vmatpush2.msra.mxu0 0.0
    %150 = vmatprep.subr.mxu0 0.0
    %151 = vmatpush2.msra.mxu0 0.0
    %152 = vmatprep.subr.mxu0 0.0
    %153 = vmatpush2.msra.mxu0 0.0
    %154 = vmatprep.subr.mxu0 0.0
    %155 = vmatpush2.msra.mxu0 0.0
    %156 = vmatprep.subr.mxu0 0.0
    %157 = vmatpush2.msra.mxu0 0.0
    %158 = vmatprep.mubr.f32.mxu0 0.0
    %159 = vmatmul.mubr.f32.gmra.mxu0 %v92
    %v160 = vpop.f32.mrf.mxu0
    %v161 = vadd.f32 %v89, %v160
    %v162 = vpop.f32.mrf.mxu0
    %163 = vdwg.mxu0
    %v164 = vmax.f32 %v161, 0.0
    %165 = vmatprep.subr.mxu0 0.0
    %166 = vmatpush1.xpose.msra.mxu0 0.0
    %167 = vmatprep.subr.mxu0 0.0
    %168 = vmatpush1.xpose.msra.mxu0 0.0
    %169 = vmatprep.subr.mxu0 0.0
    %170 = vmatpush1.xpose.msra.mxu0 0.0
    %171 = vmatprep.subr.mxu0 0.0
    %172 = vmatpush1.xpose.msra.mxu0 0.0
    %173 = vmatprep.subr.mxu0 0.0
    %174 = vmatpush1.xpose.msra.mxu0 0.0
    %175 = vmatprep.subr.mxu0 0.0
    %176 = vmatpush1.xpose.msra.mxu0 0.0
    %177 = vmatprep.subr.mxu0 0.0
    %178 = vmatpush1.xpose.msra.mxu0 0.0
    %179 = vmatprep.subr.mxu0 0.0
    %180 = vmatpush1.xpose.msra.mxu0 0.0
    %181 = vmatprep.subr.mxu0 0.0
    %182 = vmatpush1.xpose.msra.mxu0 0.0
    %183 = vmatprep.subr.mxu0 0.0
    %184 = vmatpush1.xpose.msra.mxu0 0.0
    %185 = vmatprep.subr.mxu0 0.0
    %186 = vmatpush1.xpose.msra.mxu0 0.0
    %187 = vmatprep.subr.mxu0 0.0
    %188 = vmatpush1.xpose.msra.mxu0 0.0
    %189 = vmatprep.subr.mxu0 0.0
    %190 = vmatpush1.xpose.msra.mxu0 0.0
    %191 = vmatprep.subr.mxu0 0.0
    %192 = vmatpush1.xpose.msra.mxu0 0.0
    %193 = vmatprep.subr.mxu0 0.0
    %194 = vmatpush1.xpose.msra.mxu0 0.0
    %195 = vmatprep.subr.mxu0 0.0
    %196 = vmatpush1.xpose.msra.mxu0 %v164
    %197 = vmatprep.subr.mxu0 0.0
    %198 = vmatpush2.xpose.msra.mxu0 0.0
    %199 = vmatprep.subr.mxu0 0.0
    %200 = vmatpush2.xpose.msra.mxu0 0.0
    %201 = vmatprep.subr.mxu0 0.0
    %202 = vmatpush2.xpose.msra.mxu0 0.0
    %203 = vmatprep.subr.mxu0 0.0
    %204 = vmatpush2.xpose.msra.mxu0 0.0
    %205 = vmatprep.subr.mxu0 0.0
    %206 = vmatpush2.xpose.msra.mxu0 0.0
    %207 = vmatprep.subr.mxu0 0.0
    %208 = vmatpush2.xpose.msra.mxu0 0.0
    %209 = vmatprep.subr.mxu0 0.0
    %210 = vmatpush2.xpose.msra.mxu0 0.0
    %211 = vmatprep.subr.mxu0 0.0
    %212 = vmatpush2.xpose.msra.mxu0 0.0
    %213 = vmatprep.subr.mxu0 0.0
    %214 = vmatpush2.xpose.msra.mxu0 0.0
    %215 = vmatprep.subr.mxu0 0.0
    %216 = vmatpush2.xpose.msra.mxu0 0.0
    %217 = vmatprep.subr.mxu0 0.0
    %218 = vmatpush2.xpose.msra.mxu0 0.0
    %219 = vmatprep.subr.mxu0 0.0
    %220 = vmatpush2.xpose.msra.mxu0 0.0
    %221 = vmatprep.subr.mxu0 0.0
    %222 = vmatpush2.xpose.msra.mxu0 0.0
    %223 = vmatprep.subr.mxu0 0.0
    %224 = vmatpush2.xpose.msra.mxu0 0.0
    %225 = vmatprep.subr.mxu0 0.0
    %226 = vmatpush2.xpose.msra.mxu0 0.0
    %227 = vmatprep.subr.mxu0 0.0
    %228 = vmatpush2.xpose.msra.mxu0 0.0
    %229 = vmatprep.mubr.f32.mxu0 0.0
    %230 = vmatmul.mubr.f32.gmra.mxu0 %v84
    %v231 = vpop.f32.mrf.mxu0
    %v232 = vadd.f32 0.0, %v231
    %v233 = vpop.f32.mrf.mxu0
    %234 = vdwg.mxu0
    %vm235 = vcmask 57344
    %v236 = vsel %vm235, %v232, -inf
    %237 = vmax.xlane.f32.xlu0 %v236
    %v238 = vpop.xlane.xlu0 %237
    %v239 = vsub.f32 %v232, %v238
    %v240 = vmul.f32 %v239, 1.442695
    %v241 = vpow.pop %v240
    %v242 = vsel %vm235, %v241, 0.0
    %243 = vadd.xlane.f32.xlu0 %v242
    %v244 = vpop.xlane.xlu0 %243
    %v245 = vrcp.pop %v244
    %v246 = vmul.f32 %v241, %v245
    %247 = vst.msk [vmem:[#allocation2] sm:$0x1] %vm235, %v246
    %v248 = vld [vmem:[%s0 + $0x1] sm:$0x1]
    %v249 = vlaneseq
    %v250 = vshrl.u32 %v249, 7
    %v251 = vsub.s32 0, %v250
    %v252 = vrot.slane %v248, %v251
    %v254 = vsel %vm90, %v75, 0
    %256 = vmatprep.subr.mxu0 0.0
    %257 = vmatpush1.msra.mxu0 0.0
    %258 = vmatprep.subr.mxu0 0.0
    %259 = vmatpush1.msra.mxu0 0.0
    %260 = vmatprep.subr.mxu0 0.0
    %261 = vmatpush1.msra.mxu0 0.0
    %262 = vmatprep.subr.mxu0 0.0
    %263 = vmatpush1.msra.mxu0 0.0
    %264 = vmatprep.subr.mxu0 0.0
    %265 = vmatpush1.msra.mxu0 0.0
    %266 = vmatprep.subr.mxu0 0.0
    %267 = vmatpush1.msra.mxu0 0.0
    %268 = vmatprep.subr.mxu0 0.0
    %269 = vmatpush1.msra.mxu0 0.0
    %270 = vmatprep.subr.mxu0 0.0
    %271 = vmatpush1.msra.mxu0 0.0
    %272 = vmatprep.subr.mxu0 0.0
    %273 = vmatpush1.msra.mxu0 %v83
    %274 = vmatprep.subr.mxu0 0.0
    %275 = vmatpush1.msra.mxu0 %v82
    %276 = vmatprep.subr.mxu0 0.0
    %277 = vmatpush1.msra.mxu0 %v81
    %278 = vmatprep.subr.mxu0 0.0
    %279 = vmatpush1.msra.mxu0 %v80
    %280 = vmatprep.subr.mxu0 0.0
    %281 = vmatpush1.msra.mxu0 %v79
    %282 = vmatprep.subr.mxu0 0.0
    %283 = vmatpush1.msra.mxu0 %v78
    %284 = vmatprep.subr.mxu0 0.0
    %285 = vmatpush1.msra.mxu0 %v77
    %286 = vmatprep.subr.mxu0 0.0
    %287 = vmatpush1.msra.mxu0 %v76
    %288 = vmatprep.subr.mxu0 0.0
    %289 = vmatpush2.msra.mxu0 0.0
    %290 = vmatprep.subr.mxu0 0.0
    %291 = vmatpush2.msra.mxu0 0.0
    %292 = vmatprep.subr.mxu0 0.0
    %293 = vmatpush2.msra.mxu0 0.0
    %294 = vmatprep.subr.mxu0 0.0
    %295 = vmatpush2.msra.mxu0 0.0
    %296 = vmatprep.subr.mxu0 0.0
    %297 = vmatpush2.msra.mxu0 0.0
    %298 = vmatprep.subr.mxu0 0.0
    %299 = vmatpush2.msra.mxu0 0.0
    %300 = vmatprep.subr.mxu0 0.0
    %301 = vmatpush2.msra.mxu0 0.0
    %302 = vmatprep.subr.mxu0 0.0
    %303 = vmatpush2.msra.mxu0 0.0
    %304 = vmatprep.subr.mxu0 0.0
    %305 = vmatpush2.msra.mxu0 0.0
    %306 = vmatprep.subr.mxu0 0.0
    %307 = vmatpush2.msra.mxu0 0.0
    %308 = vmatprep.subr.mxu0 0.0
    %309 = vmatpush2.msra.mxu0 0.0
    %310 = vmatprep.subr.mxu0 0.0
    %311 = vmatpush2.msra.mxu0 0.0
    %312 = vmatprep.subr.mxu0 0.0
    %313 = vmatpush2.msra.mxu0 0.0
    %314 = vmatprep.subr.mxu0 0.0
    %315 = vmatpush2.msra.mxu0 0.0
    %316 = vmatprep.subr.mxu0 0.0
    %317 = vmatpush2.msra.mxu0 0.0
    %318 = vmatprep.subr.mxu0 0.0
    %319 = vmatpush2.msra.mxu0 0.0
    %320 = vmatprep.mubr.f32.mxu0 0.0
    %321 = vmatmul.mubr.f32.gmra.mxu0 %v254
    %v322 = vpop.f32.mrf.mxu0
    %v323 = vadd.f32 %v252, %v322
    %v324 = vpop.f32.mrf.mxu0
    %325 = vdwg.mxu0
    %v326 = vmax.f32 %v323, 0.0
    %327 = vmatprep.subr.mxu0 0.0
    %328 = vmatpush1.xpose.msra.mxu0 0.0
    %329 = vmatprep.subr.mxu0 0.0
    %330 = vmatpush1.xpose.msra.mxu0 0.0
    %331 = vmatprep.subr.mxu0 0.0
    %332 = vmatpush1.xpose.msra.mxu0 0.0
    %333 = vmatprep.subr.mxu0 0.0
    %334 = vmatpush1.xpose.msra.mxu0 0.0
    %335 = vmatprep.subr.mxu0 0.0
    %336 = vmatpush1.xpose.msra.mxu0 0.0
    %337 = vmatprep.subr.mxu0 0.0
    %338 = vmatpush1.xpose.msra.mxu0 0.0
    %339 = vmatprep.subr.mxu0 0.0
    %340 = vmatpush1.xpose.msra.mxu0 0.0
    %341 = vmatprep.subr.mxu0 0.0
    %342 = vmatpush1.xpose.msra.mxu0 0.0
    %343 = vmatprep.subr.mxu0 0.0
    %344 = vmatpush1.xpose.msra.mxu0 0.0
    %345 = vmatprep.subr.mxu0 0.0
    %346 = vmatpush1.xpose.msra.mxu0 0.0
    %347 = vmatprep.subr.mxu0 0.0
    %348 = vmatpush1.xpose.msra.mxu0 0.0
    %349 = vmatprep.subr.mxu0 0.0
    %350 = vmatpush1.xpose.msra.mxu0 0.0
    %351 = vmatprep.subr.mxu0 0.0
    %352 = vmatpush1.xpose.msra.mxu0 0.0
    %353 = vmatprep.subr.mxu0 0.0
    %354 = vmatpush1.xpose.msra.mxu0 0.0
    %355 = vmatprep.subr.mxu0 0.0
    %356 = vmatpush1.xpose.msra.mxu0 0.0
    %357 = vmatprep.subr.mxu0 0.0
    %358 = vmatpush1.xpose.msra.mxu0 %v326
    %359 = vmatprep.subr.mxu0 0.0
    %360 = vmatpush2.xpose.msra.mxu0 0.0
    %361 = vmatprep.subr.mxu0 0.0
    %362 = vmatpush2.xpose.msra.mxu0 0.0
    %363 = vmatprep.subr.mxu0 0.0
    %364 = vmatpush2.xpose.msra.mxu0 0.0
    %365 = vmatprep.subr.mxu0 0.0
    %366 = vmatpush2.xpose.msra.mxu0 0.0
    %367 = vmatprep.subr.mxu0 0.0
    %368 = vmatpush2.xpose.msra.mxu0 0.0
    %369 = vmatprep.subr.mxu0 0.0
    %370 = vmatpush2.xpose.msra.mxu0 0.0
    %371 = vmatprep.subr.mxu0 0.0
    %372 = vmatpush2.xpose.msra.mxu0 0.0
    %373 = vmatprep.subr.mxu0 0.0
    %374 = vmatpush2.xpose.msra.mxu0 0.0
    %375 = vmatprep.subr.mxu0 0.0
    %376 = vmatpush2.xpose.msra.mxu0 0.0
    %377 = vmatprep.subr.mxu0 0.0
    %378 = vmatpush2.xpose.msra.mxu0 0.0
    %379 = vmatprep.subr.mxu0 0.0
    %380 = vmatpush2.xpose.msra.mxu0 0.0
    %381 = vmatprep.subr.mxu0 0.0
    %382 = vmatpush2.xpose.msra.mxu0 0.0
    %383 = vmatprep.subr.mxu0 0.0
    %384 = vmatpush2.xpose.msra.mxu0 0.0
    %385 = vmatprep.subr.mxu0 0.0
    %386 = vmatpush2.xpose.msra.mxu0 0.0
    %387 = vmatprep.subr.mxu0 0.0
    %388 = vmatpush2.xpose.msra.mxu0 0.0
    %389 = vmatprep.subr.mxu0 0.0
    %390 = vmatpush2.xpose.msra.mxu0 0.0
    %391 = vmatprep.mubr.f32.mxu0 0.0
    %392 = vmatmul.mubr.f32.gmra.mxu0 %v84
    %v393 = vpop.f32.mrf.mxu0
    %v394 = vadd.f32 0.0, %v393
    %v395 = vpop.f32.mrf.mxu0
    %396 = vdwg.mxu0
    %v397 = vsel %vm235, %v394, -inf
    %398 = vmax.xlane.f32.xlu0 %v397
    %v399 = vpop.xlane.xlu0 %398
    %v400 = vsub.f32 %v394, %v399
    %v401 = vmul.f32 %v400, 1.442695
    %v402 = vpow.pop %v401
    %v403 = vsel %vm235, %v402, 0.0
    %404 = vadd.xlane.f32.xlu0 %v403
    %v405 = vpop.xlane.xlu0 %404
    %v406 = vrcp.pop %v405
    %v407 = vmul.f32 %v402, %v406
    %408 = vst.msk [vmem:[#allocation2 + $0x1] sm:$0x1] %vm235, %v407
    // Predicated region
    $region18: #{attention_forward.1} parent=1 // pred_check
      _
    $region19: #{attention_forward.1} parent=1 // pred_check_branch
      %410 = sbr.rel (0) target = $region21
    $region20: #{attention_forward.1} parent=1 // pred_region
      %s412 = ssub.s32 32, 32
      %413 = vsyncadd [#allocation3], %s412
      %s415 = sshll.u32 [#allocation2], 4
      %s416 = int_to_ptr.vmem [resolvable:$true] %s415
      %418 = dma.vmem_to_hbm [thread:$0]  %s416, 32, %s4, [#allocation3]
    $region21: #{attention_forward.1} parent=1 // pred_fallthru
      _
    // Predicated region
    $region22: #{attention_forward.1} parent=1 // pred_check
      _
    $region23: #{attention_forward.1} parent=1 // pred_check_branch
      %420 = sbr.rel (0) target = $region25
    $region24: #{attention_forward.1} parent=1 // pred_region
      %421 = dma.done [#allocation3], 32
    $region25: #{attention_forward.1} parent=1 // pred_fallthru
      _
    %422 = vsyncpa [#allocation3], 1

</llo_original>
